<compile_context>
chip_gen: v5e
topology: v5e:2x2
jax: 0.10.0
libtpu: 0.0.40
codegen_flags: <defaults>
</compile_context>

<pallas_src>
import jax
import jax.numpy as jnp
from jax.experimental import pallas as pl
from jax.experimental.pallas import tpu as pltpu

HIDDEN_PAD = 128  # lane-dense padding of the 4-wide DNN hidden layer


def _round_up(v, m):
    return (v + m - 1) // m * m


def _pad2(a, rows, cols):
    a = jnp.asarray(a, jnp.float32)
    return jnp.zeros((rows, cols), jnp.float32).at[: a.shape[0], : a.shape[1]].set(a)


def _vmem_ceiling():
    """Per-generation usable-VMEM ceiling (leave headroom below physical)."""
    try:
        cap = int(pltpu.get_tpu_info().vmem_capacity_bytes)
        return max(int(cap * 0.85), 32 << 20)
    except Exception:
        return 64 << 20  # safe on every generation


def _vmem_estimate(tile_b, d_pad, w_itemsize):
    # Resident params (x2 in case the pipeline double-buffers invariant blocks),
    # double-buffered x/out streams, and ~12 live (tile_b, d_pad) f32 intermediates.
    param = w_itemsize * (2 * d_pad * 2 * d_pad + d_pad * HIDDEN_PAD) + 4 * (8 * 2 * d_pad)
    param *= 2
    stream = 2 * (w_itemsize * tile_b * d_pad + 4 * tile_b)
    inter = 4 * tile_b * (12 * d_pad + 2 * HIDDEN_PAD)
    return int(1.25 * (param + stream + inter)) + (8 << 20)


# --------------------------------------------------------------------------------------
# Kernel body: one batch tile, all parameters resident in VMEM.
# --------------------------------------------------------------------------------------
def _edcn_kernel(x_ref, wcd1_ref, wcd2_ref, w1_ref, bias_ref, out_ref):
    f32 = jnp.float32
    mm_dtype = wcd1_ref.dtype          # f32 or bf16 (accumulation always f32)
    d = wcd1_ref.shape[0]              # d_pad
    h_pad = w1_ref.shape[1]            # HIDDEN_PAD

    def mm(lhs, w_ref):
        return jnp.dot(lhs.astype(mm_dtype), w_ref[...], preferred_element_type=f32)

    x_in = x_ref[...]
    x0 = x_in.astype(f32)

    # ---- bridge layer 1: one wide matmul -> [cross_pre | deep_pre] ----
    pre1 = mm(x_in, wcd1_ref) + bias_ref[0:1, :].astype(f32)
    c1 = x0 * pre1[:, :d] + x0
    d1 = jnp.maximum(pre1[:, d:], 0.0)
    x1 = c1 * d1

    # ---- bridge layer 2 ----
    pre2 = mm(x1, wcd2_ref) + bias_ref[1:2, :].astype(f32)
    c2 = x0 * pre2[:, :d] + x1
    d2 = jnp.maximum(pre2[:, d:], 0.0)
    x2 = c2 * d2

    # ---- DNN head: D -> 4 (padded to 128 lanes on the MXU), relu ----
    h = jnp.maximum(mm(x2, w1_ref) + bias_ref[2:3, :h_pad].astype(f32), 0.0)

    # ---- 4 -> 1 on the VPU: weighted lane-sum (w2 row is zero past lane 3) ----
    out_col = jnp.sum(h * bias_ref[3:4, :h_pad].astype(f32), axis=-1, keepdims=True)
    out_col = out_col + bias_ref[4:5, :1].astype(f32)

    # Single scalar per row: (tile_b, 1) store — 4 B/row of HBM write traffic.
    out_ref[...] = out_col.astype(out_ref.dtype)


# --------------------------------------------------------------------------------------
# Wrapper: padding, parameter packing, BlockSpecs, grid, VMEM budget.
# --------------------------------------------------------------------------------------
def edcn_forward(x, params, *, tile_b=None, use_bf16_matmul=False, interpret=False):
    """EDCNModel forward. x: (batch, n_dim) f32. Returns (batch, 1) f32."""
    x = jnp.asarray(x, jnp.float32)
    batch, n_dim = x.shape
    d_pad = _round_up(max(n_dim, 1), 128)
    mm_dtype = jnp.bfloat16 if use_bf16_matmul else jnp.float32
    w_itemsize = 2 if use_bf16_matmul else 4

    # ---- batch tile: default 1024 (amortize per-step overhead), shrink to fit VMEM ----
    if tile_b is None:
        tile_b = 1024
    tile_b = max(8, _round_up(min(tile_b, _round_up(batch, 8)), 8))
    ceiling = _vmem_ceiling()
    while _vmem_estimate(tile_b, d_pad, w_itemsize) > ceiling and tile_b > 64:
        tile_b = max(8, _round_up(tile_b // 2, 8))
    b_pad = _round_up(batch, tile_b)

    # ---- pack parameters (zero padding is exact through both bridge layers & head) ----
    xp = _pad2(x, b_pad, d_pad).astype(mm_dtype)

    wc1 = _pad2(params["wc1"], d_pad, d_pad)
    wd1 = _pad2(params["wd1"], d_pad, d_pad)
    wc2 = _pad2(params["wc2"], d_pad, d_pad)
    wd2 = _pad2(params["wd2"], d_pad, d_pad)
    wcd1 = jnp.concatenate([wc1, wd1], axis=1).astype(mm_dtype)   # (d_pad, 2*d_pad)
    wcd2 = jnp.concatenate([wc2, wd2], axis=1).astype(mm_dtype)
    w1 = _pad2(params["w1"], d_pad, HIDDEN_PAD).astype(mm_dtype)

    h1 = params["w1"].shape[1]
    bias = jnp.zeros((8, 2 * d_pad), jnp.float32)
    bias = bias.at[0, :n_dim].set(jnp.asarray(params["bc1"], jnp.float32))
    bias = bias.at[0, d_pad:d_pad + n_dim].set(jnp.asarray(params["bd1"], jnp.float32))
    bias = bias.at[1, :n_dim].set(jnp.asarray(params["bc2"], jnp.float32))
    bias = bias.at[1, d_pad:d_pad + n_dim].set(jnp.asarray(params["bd2"], jnp.float32))
    bias = bias.at[2, :h1].set(jnp.asarray(params["b1"], jnp.float32))
    bias = bias.at[3, :h1].set(jnp.asarray(params["w2"], jnp.float32).reshape(-1))
    bias = bias.at[4, 0].set(jnp.asarray(params["b2"], jnp.float32).reshape(()))

    grid = (b_pad // tile_b,)

    # Parameter specs ignore the batch grid index -> DMA'd once, resident in VMEM.
    def const_spec(shape):
        return pl.BlockSpec(shape, lambda b: (0, 0))

    in_specs = [
        pl.BlockSpec((tile_b, d_pad), lambda b: (b, 0)),   # x tile (streamed)
        const_spec((d_pad, 2 * d_pad)),                    # [Wc1 | Wd1]
        const_spec((d_pad, 2 * d_pad)),                    # [Wc2 | Wd2]
        const_spec((d_pad, HIDDEN_PAD)),                   # W1 (D -> 4, padded to 128)
        const_spec((8, 2 * d_pad)),                        # stacked biases + b1/w2/b2
    ]
    out_specs = pl.BlockSpec((tile_b, 1), lambda b: (b, 0))

    vmem_limit = min(max(_vmem_estimate(tile_b, d_pad, w_itemsize), 32 << 20), ceiling)

    out = pl.pallas_call(
        _edcn_kernel,
        out_shape=jax.ShapeDtypeStruct((b_pad, 1), jnp.float32),
        grid_spec=pltpu.PrefetchScalarGridSpec(
            num_scalar_prefetch=0,
            grid=grid,
            in_specs=in_specs,
            out_specs=out_specs,
        ),
        compiler_params=pltpu.CompilerParams(
            dimension_semantics=("parallel",),
            vmem_limit_bytes=int(vmem_limit),
        ),
        interpret=interpret,
    )(xp, wcd1, wcd2, w1, bias)

    return out[:batch]


# --------------------------------------------------------------------------------------
# Parameter init (weights stored as (in, out) == torch Linear weight.T) and a pure-JAX
# reference of the PyTorch forward for validation.
# --------------------------------------------------------------------------------------
def init_edcn_params(key, n_dim, hidden_units=(4, 1)):
    h1, h2 = hidden_units
    ks = jax.random.split(key, 6)

    def lin(k, fan_in, fan_out):
        bound = 1.0 / jnp.sqrt(jnp.float32(fan_in))
        kw, kb = jax.random.split(k)
        w = jax.random.uniform(kw, (fan_in, fan_out), jnp.float32, -bound, bound)
        b = jax.random.uniform(kb, (fan_out,), jnp.float32, -bound, bound)
        return w, b

    p = {}
    p["wc1"], p["bc1"] = lin(ks[0], n_dim, n_dim)
    p["wd1"], p["bd1"] = lin(ks[1], n_dim, n_dim)
    p["wc2"], p["bc2"] = lin(ks[2], n_dim, n_dim)
    p["wd2"], p["bd2"] = lin(ks[3], n_dim, n_dim)
    p["w1"], p["b1"] = lin(ks[4], n_dim, h1)
    p["w2"], p["b2"] = lin(ks[5], h1, h2)
    return p


def edcn_reference(x, params):
    x = jnp.asarray(x, jnp.float32)
    x0 = x
    xi = x
    for li in ("1", "2"):
        cross = x0 * (xi @ params[f"wc{li}"] + params[f"bc{li}"]) + xi
        deep = jax.nn.relu(xi @ params[f"wd{li}"] + params[f"bd{li}"])
        xi = cross * deep
    h = jax.nn.relu(xi @ params["w1"] + params["b1"])
    return h @ params["w2"] + params["b2"]


if __name__ == "__main__":
    key = jax.random.PRNGKey(0)
    k_x, k_p = jax.random.split(key)

    batch, n_dim = 16, 24          # small, deliberately 128-unaligned (exercises padding)
    x = jax.random.normal(k_x, (batch, n_dim), jnp.float32)
    params = init_edcn_params(k_p, n_dim, hidden_units=(4, 1))
    ref = edcn_reference(x, params)

    # f32 path, tile_b=8 -> a 2-step batch grid (real workloads use the 1024 default).
    out = jax.block_until_ready(edcn_forward(x, params, tile_b=8))
    assert out.shape == (batch, 1), out.shape
    if not jnp.allclose(out, ref, rtol=1e-2, atol=1e-2):
        max_err = float(jnp.max(jnp.abs(out - ref)))
        raise AssertionError(f"Pallas EDCN kernel (f32) mismatch vs reference (max abs err={max_err})")

    # bf16-operand path (f32 accumulation): looser tolerance, documented precision change.
    out_bf16 = jax.block_until_ready(edcn_forward(x, params, use_bf16_matmul=True))
    if not jnp.allclose(out_bf16, ref, rtol=5e-2, atol=5e-2):
        max_err = float(jnp.max(jnp.abs(out_bf16 - ref)))
        raise AssertionError(f"Pallas EDCN kernel (bf16) mismatch vs reference (max abs err={max_err})")

    print("KERNEL_OK")
</pallas_src>

<mosaic_0001>
module attributes {stable_mosaic.version = 11 : i64} {
  func.func @_edcn_kernel(%arg0: i32, %arg1: memref<8x128xf32, #tpu.memory_space<vmem>>, %arg2: memref<128x256xf32, #tpu.memory_space<vmem>>, %arg3: memref<128x256xf32, #tpu.memory_space<vmem>>, %arg4: memref<128x128xf32, #tpu.memory_space<vmem>>, %arg5: memref<8x256xf32, #tpu.memory_space<vmem>>, %arg6: memref<8x1xf32, #tpu.memory_space<vmem>>) attributes {dimension_semantics = [#tpu.dimension_semantics<parallel>], iteration_bounds = array<i64: 2>, scalar_prefetch = 0 : i64, scratch_operands = 0 : i64, tpu.core_type = #tpu.core_type<tc>, window_params = [{transform_indices = @transform_0, window_bounds = array<i64: 8, 128>}, {pipeline_mode = #tpu.pipeline_mode<synchronous>, transform_indices = @transform_1, window_bounds = array<i64: 128, 256>}, {pipeline_mode = #tpu.pipeline_mode<synchronous>, transform_indices = @transform_2, window_bounds = array<i64: 128, 256>}, {pipeline_mode = #tpu.pipeline_mode<synchronous>, transform_indices = @transform_3, window_bounds = array<i64: 128, 128>}, {pipeline_mode = #tpu.pipeline_mode<synchronous>, transform_indices = @transform_4, window_bounds = array<i64: 8, 256>}, {transform_indices = @transform_5, window_bounds = array<i64: 8, 1>}]} {
    %c0 = arith.constant 0 : index
    %c0_0 = arith.constant 0 : index
    %0 = vector.load %arg1[%c0, %c0_0] : memref<8x128xf32, #tpu.memory_space<vmem>>, vector<8x128xf32>
    %c0_1 = arith.constant 0 : index
    %c0_2 = arith.constant 0 : index
    %1 = vector.load %arg2[%c0_1, %c0_2] : memref<128x256xf32, #tpu.memory_space<vmem>>, vector<128x256xf32>
    %cst = arith.constant dense<0.000000e+00> : vector<8x256xf32>
    %2 = tpu.matmul %0, %1, %cst {dimension_numbers = #tpu.dot_dimension_numbers<[1], [0], [0], [1], [0, 0, 1, 1], [], []>} : vector<8x128xf32>, vector<128x256xf32>, vector<8x256xf32> -> vector<8x256xf32>
    %c0_3 = arith.constant 0 : index
    %c0_4 = arith.constant 0 : index
    %3 = vector.load %arg5[%c0_3, %c0_4] : memref<8x256xf32, #tpu.memory_space<vmem>>, vector<1x256xf32>
    %4 = vector.broadcast %3 : vector<1x256xf32> to vector<8x256xf32>
    %5 = arith.addf %2, %4 : vector<8x256xf32>
    %6 = vector.extract_strided_slice %5 {offsets = [0, 0], sizes = [8, 128], strides = [1, 1]} : vector<8x256xf32> to vector<8x128xf32>
    %7 = arith.mulf %0, %6 : vector<8x128xf32>
    %8 = arith.addf %7, %0 : vector<8x128xf32>
    %9 = vector.extract_strided_slice %5 {offsets = [0, 128], sizes = [8, 128], strides = [1, 1]} : vector<8x256xf32> to vector<8x128xf32>
    %cst_5 = arith.constant 0.000000e+00 : f32
    %10 = vector.broadcast %cst_5 : f32 to vector<8x128xf32>
    %11 = arith.maximumf %9, %10 : vector<8x128xf32>
    %12 = arith.mulf %8, %11 : vector<8x128xf32>
    %c0_6 = arith.constant 0 : index
    %c0_7 = arith.constant 0 : index
    %13 = vector.load %arg3[%c0_6, %c0_7] : memref<128x256xf32, #tpu.memory_space<vmem>>, vector<128x256xf32>
    %cst_8 = arith.constant dense<0.000000e+00> : vector<8x256xf32>
    %14 = tpu.matmul %12, %13, %cst_8 {dimension_numbers = #tpu.dot_dimension_numbers<[1], [0], [0], [1], [0, 0, 1, 1], [], []>} : vector<8x128xf32>, vector<128x256xf32>, vector<8x256xf32> -> vector<8x256xf32>
    %c1 = arith.constant 1 : index
    %c0_9 = arith.constant 0 : index
    %15 = vector.load %arg5[%c1, %c0_9] : memref<8x256xf32, #tpu.memory_space<vmem>>, vector<1x256xf32>
    %16 = vector.broadcast %15 : vector<1x256xf32> to vector<8x256xf32>
    %17 = arith.addf %14, %16 : vector<8x256xf32>
    %18 = vector.extract_strided_slice %17 {offsets = [0, 0], sizes = [8, 128], strides = [1, 1]} : vector<8x256xf32> to vector<8x128xf32>
    %19 = arith.mulf %0, %18 : vector<8x128xf32>
    %20 = arith.addf %19, %12 : vector<8x128xf32>
    %21 = vector.extract_strided_slice %17 {offsets = [0, 128], sizes = [8, 128], strides = [1, 1]} : vector<8x256xf32> to vector<8x128xf32>
    %cst_10 = arith.constant 0.000000e+00 : f32
    %22 = vector.broadcast %cst_10 : f32 to vector<8x128xf32>
    %23 = arith.maximumf %21, %22 : vector<8x128xf32>
    %24 = arith.mulf %20, %23 : vector<8x128xf32>
    %c0_11 = arith.constant 0 : index
    %c0_12 = arith.constant 0 : index
    %25 = vector.load %arg4[%c0_11, %c0_12] : memref<128x128xf32, #tpu.memory_space<vmem>>, vector<128x128xf32>
    %cst_13 = arith.constant dense<0.000000e+00> : vector<8x128xf32>
    %26 = tpu.matmul %24, %25, %cst_13 {dimension_numbers = #tpu.dot_dimension_numbers<[1], [0], [0], [1], [0, 0, 1, 1], [], []>} : vector<8x128xf32>, vector<128x128xf32>, vector<8x128xf32> -> vector<8x128xf32>
    %c2 = arith.constant 2 : index
    %c0_14 = arith.constant 0 : index
    %27 = vector.load %arg5[%c2, %c0_14] : memref<8x256xf32, #tpu.memory_space<vmem>>, vector<1x128xf32>
    %28 = vector.broadcast %27 : vector<1x128xf32> to vector<8x128xf32>
    %29 = arith.addf %26, %28 : vector<8x128xf32>
    %cst_15 = arith.constant 0.000000e+00 : f32
    %30 = vector.broadcast %cst_15 : f32 to vector<8x128xf32>
    %31 = arith.maximumf %29, %30 : vector<8x128xf32>
    %c3 = arith.constant 3 : index
    %c0_16 = arith.constant 0 : index
    %32 = vector.load %arg5[%c3, %c0_16] : memref<8x256xf32, #tpu.memory_space<vmem>>, vector<1x128xf32>
    %33 = vector.broadcast %32 : vector<1x128xf32> to vector<8x128xf32>
    %34 = arith.mulf %31, %33 : vector<8x128xf32>
    %cst_17 = arith.constant dense<0.000000e+00> : vector<8xf32>
    %35 = vector.multi_reduction <add>, %34, %cst_17 [1] : vector<8x128xf32> to vector<8xf32>
    %36 = vector.shape_cast %35 : vector<8xf32> to vector<8x1xf32>
    %c4 = arith.constant 4 : index
    %c0_18 = arith.constant 0 : index
    %37 = vector.load %arg5[%c4, %c0_18] : memref<8x256xf32, #tpu.memory_space<vmem>>, vector<1x1xf32>
    %38 = vector.broadcast %37 : vector<1x1xf32> to vector<8x1xf32>
    %39 = arith.addf %36, %38 : vector<8x1xf32>
    %c0_19 = arith.constant 0 : index
    %c0_20 = arith.constant 0 : index
    %40 = vector.load %arg6[%c0_19, %c0_20] : memref<8x1xf32, #tpu.memory_space<vmem>>, vector<8x1xf32>
    tpu.vector_store %arg6[%c0_19, %c0_20], %39 {strides = array<i32>} : memref<8x1xf32, #tpu.memory_space<vmem>>, vector<8x1xf32>,
    return
  }
  func.func @transform_0(%arg0: i32) -> (i32, i32) {
    %c0_i32 = arith.constant 0 : i32
    %c0_i32_0 = arith.constant 0 : i32
    return %arg0, %c0_i32 : i32, i32
  }
  func.func @transform_1(%arg0: i32) -> (i32, i32) {
    %c0_i32 = arith.constant 0 : i32
    %c0_i32_0 = arith.constant 0 : i32
    %c0_i32_1 = arith.constant 0 : i32
    return %c0_i32, %c0_i32_0 : i32, i32
  }
  func.func @transform_2(%arg0: i32) -> (i32, i32) {
    %c0_i32 = arith.constant 0 : i32
    %c0_i32_0 = arith.constant 0 : i32
    %c0_i32_1 = arith.constant 0 : i32
    return %c0_i32, %c0_i32_0 : i32, i32
  }
  func.func @transform_3(%arg0: i32) -> (i32, i32) {
    %c0_i32 = arith.constant 0 : i32
    %c0_i32_0 = arith.constant 0 : i32
    %c0_i32_1 = arith.constant 0 : i32
    return %c0_i32, %c0_i32_0 : i32, i32
  }
  func.func @transform_4(%arg0: i32) -> (i32, i32) {
    %c0_i32 = arith.constant 0 : i32
    %c0_i32_0 = arith.constant 0 : i32
    %c0_i32_1 = arith.constant 0 : i32
    return %c0_i32, %c0_i32_0 : i32, i32
  }
  func.func @transform_5(%arg0: i32) -> (i32, i32) {
    %c0_i32 = arith.constant 0 : i32
    %c0_i32_0 = arith.constant 0 : i32
    return %arg0, %c0_i32 : i32, i32
  }
}

</mosaic_0001>

<llo_original>
// kernel: tpu_custom_call.1
$region0: #{tpu_custom_call.1}
  #allocation0 [shape = 'u32[]', space=smem, size = 0x4, offset = 0x4, fixed_abs, tag = 'smem constant byte address 0x4 - core index']
  #allocation1 [shape = 'u32[72,128]{1,0:T(1,128)}', space=vmem, size = 0x9000, scoped, tag = 'internal scratch']
  %s0 = inlined_call_operand.hbm [shape: f32[16,128], index: 0, kind: input, shape index: {}]
  %s1 = inlined_call_operand.hbm [shape: f32[128,256], index: 1, kind: input, shape index: {}]
  %s2 = inlined_call_operand.hbm [shape: f32[128,256], index: 2, kind: input, shape index: {}]
  %s3 = inlined_call_operand.hbm [shape: f32[128,128], index: 3, kind: input, shape index: {}]
  %s4 = inlined_call_operand.hbm [shape: f32[8,256], index: 4, kind: input, shape index: {}]
  %s5 = inlined_call_operand.vmem [shape: f32[16,1], index: 5, kind: output, shape index: {}]
  %s6 = sld [smem:[#allocation0]]
  $region73: #{tpu_custom_call.1} parent=0
    _
  %s8 = ssub.s32 1, %s6
  %s9 = scalar_select 0, %s8, %s6
  $region1: #{tpu_custom_call.1} parent=0
    #allocation2 [shape = 'u8[8192]{0}', space=vmem, size = 0x2000, scoped, tag = 'input window, operand 0']
    #allocation3 [shape = 's32[2]{0}', space=sflag, size = 0x8, scoped, tag = 'scoped memory for tpu_custom_call.1']
    #allocation4 [shape = 'u8[131072]{0}', space=vmem, size = 0x20000, scoped, tag = 'input window, operand 1, single buffered']
    #allocation5 [shape = 's32[1]{0}', space=sflag, size = 0x4, scoped, tag = 'scoped memory for tpu_custom_call.1']
    #allocation6 [shape = 'u8[131072]{0}', space=vmem, size = 0x20000, scoped, tag = 'input window, operand 2, single buffered']
    #allocation7 [shape = 'u8[65536]{0}', space=vmem, size = 0x10000, scoped, tag = 'input window, operand 3, single buffered']
    #allocation8 [shape = 's32[1]{0}', space=sflag, size = 0x4, scoped, tag = 'scoped memory for tpu_custom_call.1']
    #allocation9 [shape = 'u8[8192]{0}', space=vmem, size = 0x2000, scoped, tag = 'input window, operand 4, single buffered']
    %10 = vsyncpa [#allocation3], 0
    %s11 = scalar_lea.sflag [#allocation3], 1
    %12 = vsyncpa %s11, 0
    %13 = vsyncpa [#allocation5], 0
    %14 = vsyncpa [#allocation8], 0
    loop: start=0, step=1, limit=4
    $region2: #{tpu_custom_call.1} parent=1 // loop_pre_header
      _
    $region3: #{tpu_custom_call.1} parent=1 // loop_header
      %s16 = sphi 0, %s20
      %p17 = scmp.ge.s32.totalorder %s16, 4
      %s26 = sphi 0, %s28
      %s29 = sphi 0, %s26
      %s30 = sphi 0, %s29
      %s46 = sphi 0, %s30
      %s50 = sphi 0, %s50
      %s52 = sphi 0, %s50
      %s53 = sphi 0, %s52
      %s67 = sphi 0, %s53
      %s71 = sphi 0, %s71
      %s73 = sphi 0, %s71
      %s74 = sphi 0, %s73
      %s88 = sphi 0, %s74
      %s92 = sphi 0, %s92
      %s94 = sphi 0, %s92
      %s95 = sphi 0, %s94
      %s109 = sphi 0, %s95
      %s113 = sphi 0, %s113
      %s115 = sphi 0, %s113
      %s116 = sphi 0, %s115
      %s130 = sphi 0, %s116
      %s136 = sphi 0, %s138
      %s139 = sphi 0, %s136
      %s140 = sphi 0, %s139
      %s156 = sphi 0, %s140
    $region4: #{tpu_custom_call.1} parent=1 // loop_header_branch
      %19 = sbr.rel (%p17) target = $region8
    $region5: #{tpu_custom_call.1} parent=1 // loop_body
      %s21 = ssub.s32 %s16, 1
      %s22 = ssub.s32 %s16, 2
      %s23 = sadd.s32 %s16, 1
      %s24 = ssub.s32 %s16, %s23
      %p25 = scmp.eq.s32.totalorder %s24, 0
      %s27 = sadd.s32 %s26, 1
      %s28 = scalar_select %p25, %s26, %s27
      %p31 = pneg %p25
      %p32 = scmp.eq.s32.totalorder %s16, 1
      %p33 = por %p31, %p32
      %p34 = scmp.ne.s32.totalorder %s26, %s29
      %p35 = scmp.eq.s32.totalorder %s16, 0
      %p36 = por %p34, %p35
      %p37 = scmp.ne.s32.totalorder %s26, %s29
      %p38 = scmp.eq.s32.totalorder %s21, 1
      %p39 = por %p37, %p38
      %p40 = scmp.ne.s32.totalorder %s29, %s30
      %p41 = scmp.eq.s32.totalorder %s21, 0
      %p42 = por %p40, %p41
      %p43 = scmp.ne.s32.totalorder %s29, %s30
      %p44 = scmp.eq.s32.totalorder %s22, 1
      %p45 = por %p43, %p44
      %p47 = scmp.ne.s32.totalorder %s30, %s46
      %p48 = scmp.eq.s32.totalorder %s22, 0
      %p49 = por %p47, %p48
      %s51 = sadd.s32 %s50, 1
      %p54 = scmp.eq.s32.totalorder %s16, 1
      %p55 = scmp.ne.s32.totalorder %s50, %s52
      %p56 = scmp.eq.s32.totalorder %s16, 0
      %p57 = por %p55, %p56
      %p58 = scmp.ne.s32.totalorder %s50, %s52
      %p59 = scmp.eq.s32.totalorder %s21, 1
      %p60 = por %p58, %p59
      %p61 = scmp.ne.s32.totalorder %s52, %s53
      %p62 = scmp.eq.s32.totalorder %s21, 0
      %p63 = por %p61, %p62
      %p64 = scmp.ne.s32.totalorder %s52, %s53
      %p65 = scmp.eq.s32.totalorder %s22, 1
      %p66 = por %p64, %p65
      %p68 = scmp.ne.s32.totalorder %s53, %s67
      %p69 = scmp.eq.s32.totalorder %s22, 0
      %p70 = por %p68, %p69
      %s72 = sadd.s32 %s71, 1
      %p75 = scmp.eq.s32.totalorder %s16, 1
      %p76 = scmp.ne.s32.totalorder %s71, %s73
      %p77 = scmp.eq.s32.totalorder %s16, 0
      %p78 = por %p76, %p77
      %p79 = scmp.ne.s32.totalorder %s71, %s73
      %p80 = scmp.eq.s32.totalorder %s21, 1
      %p81 = por %p79, %p80
      %p82 = scmp.ne.s32.totalorder %s73, %s74
      %p83 = scmp.eq.s32.totalorder %s21, 0
      %p84 = por %p82, %p83
      %p85 = scmp.ne.s32.totalorder %s73, %s74
      %p86 = scmp.eq.s32.totalorder %s22, 1
      %p87 = por %p85, %p86
      %p89 = scmp.ne.s32.totalorder %s74, %s88
      %p90 = scmp.eq.s32.totalorder %s22, 0
      %p91 = por %p89, %p90
      %s93 = sadd.s32 %s92, 1
      %p96 = scmp.eq.s32.totalorder %s16, 1
      %p97 = scmp.ne.s32.totalorder %s92, %s94
      %p98 = scmp.eq.s32.totalorder %s16, 0
      %p99 = por %p97, %p98
      %p100 = scmp.ne.s32.totalorder %s92, %s94
      %p101 = scmp.eq.s32.totalorder %s21, 1
      %p102 = por %p100, %p101
      %p103 = scmp.ne.s32.totalorder %s94, %s95
      %p104 = scmp.eq.s32.totalorder %s21, 0
      %p105 = por %p103, %p104
      %p106 = scmp.ne.s32.totalorder %s94, %s95
      %p107 = scmp.eq.s32.totalorder %s22, 1
      %p108 = por %p106, %p107
      %p110 = scmp.ne.s32.totalorder %s95, %s109
      %p111 = scmp.eq.s32.totalorder %s22, 0
      %p112 = por %p110, %p111
      %s114 = sadd.s32 %s113, 1
      %p117 = scmp.eq.s32.totalorder %s16, 1
      %p118 = scmp.ne.s32.totalorder %s113, %s115
      %p119 = scmp.eq.s32.totalorder %s16, 0
      %p120 = por %p118, %p119
      %p121 = scmp.ne.s32.totalorder %s113, %s115
      %p122 = scmp.eq.s32.totalorder %s21, 1
      %p123 = por %p121, %p122
      %p124 = scmp.ne.s32.totalorder %s115, %s116
      %p125 = scmp.eq.s32.totalorder %s21, 0
      %p126 = por %p124, %p125
      %p127 = scmp.ne.s32.totalorder %s115, %s116
      %p128 = scmp.eq.s32.totalorder %s22, 1
      %p129 = por %p127, %p128
      %p131 = scmp.ne.s32.totalorder %s116, %s130
      %p132 = scmp.eq.s32.totalorder %s22, 0
      %p133 = por %p131, %p132
      %s134 = ssub.s32 %s16, %s23
      %p135 = scmp.eq.s32.totalorder %s134, 0
      %s137 = sadd.s32 %s136, 1
      %s138 = scalar_select %p135, %s136, %s137
      %p141 = pneg %p135
      %p142 = scmp.eq.s32.totalorder %s16, 1
      %p143 = por %p141, %p142
      %p144 = scmp.ne.s32.totalorder %s136, %s139
      %p145 = scmp.eq.s32.totalorder %s16, 0
      %p146 = por %p144, %p145
      %p147 = scmp.ne.s32.totalorder %s136, %s139
      %p148 = scmp.eq.s32.totalorder %s21, 1
      %p149 = por %p147, %p148
      %p150 = scmp.ne.s32.totalorder %s139, %s140
      %p151 = scmp.eq.s32.totalorder %s21, 0
      %p152 = por %p150, %p151
      %p153 = scmp.ne.s32.totalorder %s139, %s140
      %p154 = scmp.eq.s32.totalorder %s22, 1
      %p155 = por %p153, %p154
      %p157 = scmp.ne.s32.totalorder %s140, %s156
      %p158 = scmp.eq.s32.totalorder %s22, 0
      %p159 = por %p157, %p158
      %p160 = scmp.le.s32.totalorder 1, %s16
      %p161 = scmp.lt.s32.totalorder %s16, 3
      %p162 = pnand %p160, %p161
      %p163 = pneg %p162
      // Predicated region
      $region9: #{tpu_custom_call.1} parent=5 // pred_check
        _
      $region10: #{tpu_custom_call.1} parent=5 // pred_check_branch
        %165 = sbr.rel (%p162) target = $region12
      $region11: #{tpu_custom_call.1} parent=5 // pred_region
        %s166 = ssub.s32 %s16, 1
        // Predicated region
        $region13: #{tpu_custom_call.1} parent=11 // pred_check
          %p167 = pneg %p63
        $region14: #{tpu_custom_call.1} parent=11 // pred_check_branch
          %169 = sbr.rel (%p167) target = $region16
        $region15: #{tpu_custom_call.1} parent=11 // pred_region
          %171 = vsyncadd [#allocation5], 0
          %s172 = sshll.u32 %s1, 4
          %s173 = int_to_ptr.hbm [resolvable:$true] %s172
          %s174 = sshll.u32 [#allocation4], 4
          %s175 = int_to_ptr.vmem [resolvable:$true] %s174
          %180 = dma.hbm_to_vmem [thread:$0]  %s173, 4096, %s175, [#allocation5], 256, 256, 16
        $region16: #{tpu_custom_call.1} parent=11 // pred_fallthru
          _
        // Predicated region
        $region17: #{tpu_custom_call.1} parent=11 // pred_check
          %p181 = pneg %p84
        $region18: #{tpu_custom_call.1} parent=11 // pred_check_branch
          %183 = sbr.rel (%p181) target = $region20
        $region19: #{tpu_custom_call.1} parent=11 // pred_region
          %185 = vsyncadd [#allocation5], 0
          %s186 = sshll.u32 %s2, 4
          %s187 = int_to_ptr.hbm [resolvable:$true] %s186
          %s188 = sshll.u32 [#allocation6], 4
          %s189 = int_to_ptr.vmem [resolvable:$true] %s188
          %194 = dma.hbm_to_vmem [thread:$0]  %s187, 4096, %s189, [#allocation5], 256, 256, 16
        $region20: #{tpu_custom_call.1} parent=11 // pred_fallthru
          _
        // Predicated region
        $region21: #{tpu_custom_call.1} parent=11 // pred_check
          %p195 = pneg %p105
        $region22: #{tpu_custom_call.1} parent=11 // pred_check_branch
          %197 = sbr.rel (%p195) target = $region24
        $region23: #{tpu_custom_call.1} parent=11 // pred_region
          %199 = vsyncadd [#allocation8], 0
          %s200 = sshll.u32 %s3, 4
          %s201 = int_to_ptr.hbm [resolvable:$true] %s200
          %s202 = sshll.u32 [#allocation7], 4
          %s203 = int_to_ptr.vmem [resolvable:$true] %s202
          %208 = dma.hbm_to_vmem [thread:$0]  %s201, 2048, %s203, [#allocation8], 128, 128, 8
        $region24: #{tpu_custom_call.1} parent=11 // pred_fallthru
          _
        // Predicated region
        $region25: #{tpu_custom_call.1} parent=11 // pred_check
          %p209 = pneg %p126
        $region26: #{tpu_custom_call.1} parent=11 // pred_check_branch
          %211 = sbr.rel (%p209) target = $region28
        $region27: #{tpu_custom_call.1} parent=11 // pred_region
          %213 = vsyncadd [#allocation8], 0
          %s215 = sshll.u32 %s4, 4
          %s216 = int_to_ptr.hbm [resolvable:$true] %s215
          %s217 = sshll.u32 [#allocation9], 4
          %s218 = int_to_ptr.vmem [resolvable:$true] %s217
          %220 = dma.hbm_to_vmem [thread:$0]  %s216, 256, %s218, [#allocation8]
        $region28: #{tpu_custom_call.1} parent=11 // pred_fallthru
          _
      $region12: #{tpu_custom_call.1} parent=5 // pred_fallthru
        _
      %p221 = scmp.lt.s32.totalorder %s16, 2
      // Predicated region
      $region29: #{tpu_custom_call.1} parent=5 // pred_check
        %p222 = pneg %p221
      $region30: #{tpu_custom_call.1} parent=5 // pred_check_branch
        %224 = sbr.rel (%p222) target = $region32
      $region31: #{tpu_custom_call.1} parent=5 // pred_region
        // Predicated region
        $region33: #{tpu_custom_call.1} parent=31 // pred_check
          %p225 = pneg %p36
        $region34: #{tpu_custom_call.1} parent=31 // pred_check_branch
          %227 = sbr.rel (%p225) target = $region36
        $region35: #{tpu_custom_call.1} parent=31 // pred_region
          %s228 = sand.u32 %s26, 1
          %s229 = scalar_lea.sflag [#allocation3], %s228
          %s230 = sand.u32 %s26, 1
          %s231 = smul.addr %s230, 8
          %s232 = scalar_lea.vmem [#allocation2], %s231
          %234 = vsyncadd %s229, 0
          %s235 = smul.addr %s16, 8
          %s236 = scalar_lea.hbm %s0, %s235
          %s238 = sshll.u32 %s236, 4
          %s239 = int_to_ptr.hbm [resolvable:$true] %s238
          %s240 = sshll.u32 %s232, 4
          %s241 = int_to_ptr.vmem [resolvable:$true] %s240
          %243 = dma.hbm_to_vmem [thread:$0]  %s239, 128, %s241, %s229
        $region36: #{tpu_custom_call.1} parent=31 // pred_fallthru
          _
      $region32: #{tpu_custom_call.1} parent=5 // pred_fallthru
        _
      %p244 = scmp.le.s32.totalorder 1, %s16
      %p245 = scmp.lt.s32.totalorder %s16, 3
      %p246 = pnand %p244, %p245
      %p247 = pneg %p246
      // Predicated region
      $region37: #{tpu_custom_call.1} parent=5 // pred_check
        _
      $region38: #{tpu_custom_call.1} parent=5 // pred_check_branch
        %249 = sbr.rel (%p246) target = $region40
      $region39: #{tpu_custom_call.1} parent=5 // pred_region
        %s250 = ssub.s32 %s16, 1
        %s251 = sand.u32 %s29, 1
        %s252 = scalar_lea.sflag [#allocation3], %s251
        %s253 = sand.u32 %s29, 1
        %s254 = smul.addr %s253, 8
        %s255 = scalar_lea.vmem [#allocation2], %s254
        // Predicated region
        $region41: #{tpu_custom_call.1} parent=39 // pred_check
          %p256 = pneg %p42
        $region42: #{tpu_custom_call.1} parent=39 // pred_check_branch
          %258 = sbr.rel (%p256) target = $region44
        $region43: #{tpu_custom_call.1} parent=39 // pred_region
          %260 = dma.done %s252, 128
        $region44: #{tpu_custom_call.1} parent=39 // pred_fallthru
          _
        // Predicated region
        $region45: #{tpu_custom_call.1} parent=39 // pred_check
          %p261 = pneg %p63
        $region46: #{tpu_custom_call.1} parent=39 // pred_check_branch
          %263 = sbr.rel (%p261) target = $region48
        $region47: #{tpu_custom_call.1} parent=39 // pred_region
          %265 = dma.done [#allocation5], 4096
        $region48: #{tpu_custom_call.1} parent=39 // pred_fallthru
          _
        // Predicated region
        $region49: #{tpu_custom_call.1} parent=39 // pred_check
          %p266 = pneg %p84
        $region50: #{tpu_custom_call.1} parent=39 // pred_check_branch
          %268 = sbr.rel (%p266) target = $region52
        $region51: #{tpu_custom_call.1} parent=39 // pred_region
          %270 = dma.done [#allocation5], 4096
        $region52: #{tpu_custom_call.1} parent=39 // pred_fallthru
          _
        // Predicated region
        $region53: #{tpu_custom_call.1} parent=39 // pred_check
          %p271 = pneg %p105
        $region54: #{tpu_custom_call.1} parent=39 // pred_check_branch
          %273 = sbr.rel (%p271) target = $region56
        $region55: #{tpu_custom_call.1} parent=39 // pred_region
          %275 = dma.done [#allocation8], 2048
        $region56: #{tpu_custom_call.1} parent=39 // pred_fallthru
          _
        // Predicated region
        $region57: #{tpu_custom_call.1} parent=39 // pred_check
          %p276 = pneg %p126
        $region58: #{tpu_custom_call.1} parent=39 // pred_check_branch
          %278 = sbr.rel (%p276) target = $region60
        $region59: #{tpu_custom_call.1} parent=39 // pred_region
          %280 = dma.done [#allocation8], 256
        $region60: #{tpu_custom_call.1} parent=39 // pred_fallthru
          _
        %s281 = sand.u32 %s29, 1
        %s282 = scalar_lea.sflag [#allocation3], %s281
        %s283 = sand.u32 %s29, 1
        %s284 = smul.addr %s283, 8
        %s285 = scalar_lea.vmem [#allocation2], %s284
        %p286 = pneg %p42
        %p287 = pneg %p39
        %p288 = pneg %p63
        %p289 = pneg %p60
        %p290 = pneg %p84
        %p291 = pneg %p81
        %p292 = pneg %p105
        %p293 = pneg %p102
        %p294 = pneg %p126
        %p295 = pneg %p123
        %p296 = pneg %p152
        %p297 = pneg %p149
        %p298 = scmp.lt.s32.totalorder %s21, 1
        %s299 = scalar_select %p298, %s21, 1
        %s300 = smul.addr %s299, 8
        %s301 = scalar_lea.vmem %s5, %s300
        %p302 = scmp.lt.s32.totalorder %s21, 1
        %s303 = scalar_select %p302, %s21, 1
        %s304 = smul.addr %s303, 8
        %s305 = scalar_lea.vmem %s5, %s304
        %v306 = vld [vmem:[%s255] sm:$0xff]
        %v307 = vld [vmem:[#allocation4] sm:$0xff]
        %v308 = vld [vmem:[#allocation4 + $0x8] sm:$0xff]
        %v309 = vld [vmem:[#allocation4 + $0x10] sm:$0xff]
        %v310 = vld [vmem:[#allocation4 + $0x18] sm:$0xff]
        %v311 = vld [vmem:[#allocation4 + $0x20] sm:$0xff]
        %v312 = vld [vmem:[#allocation4 + $0x28] sm:$0xff]
        %v313 = vld [vmem:[#allocation4 + $0x30] sm:$0xff]
        %v314 = vld [vmem:[#allocation4 + $0x38] sm:$0xff]
        %v315 = vld [vmem:[#allocation4 + $0x40] sm:$0xff]
        %v316 = vld [vmem:[#allocation4 + $0x48] sm:$0xff]
        %v317 = vld [vmem:[#allocation4 + $0x50] sm:$0xff]
        %v318 = vld [vmem:[#allocation4 + $0x58] sm:$0xff]
        %v319 = vld [vmem:[#allocation4 + $0x60] sm:$0xff]
        %v320 = vld [vmem:[#allocation4 + $0x68] sm:$0xff]
        %v321 = vld [vmem:[#allocation4 + $0x70] sm:$0xff]
        %v322 = vld [vmem:[#allocation4 + $0x78] sm:$0xff]
        %v323 = vld [vmem:[#allocation4 + $0x80] sm:$0xff]
        %v324 = vld [vmem:[#allocation4 + $0x88] sm:$0xff]
        %v325 = vld [vmem:[#allocation4 + $0x90] sm:$0xff]
        %v326 = vld [vmem:[#allocation4 + $0x98] sm:$0xff]
        %v327 = vld [vmem:[#allocation4 + $0xa0] sm:$0xff]
        %v328 = vld [vmem:[#allocation4 + $0xa8] sm:$0xff]
        %v329 = vld [vmem:[#allocation4 + $0xb0] sm:$0xff]
        %v330 = vld [vmem:[#allocation4 + $0xb8] sm:$0xff]
        %v331 = vld [vmem:[#allocation4 + $0xc0] sm:$0xff]
        %v332 = vld [vmem:[#allocation4 + $0xc8] sm:$0xff]
        %v333 = vld [vmem:[#allocation4 + $0xd0] sm:$0xff]
        %v334 = vld [vmem:[#allocation4 + $0xd8] sm:$0xff]
        %v335 = vld [vmem:[#allocation4 + $0xe0] sm:$0xff]
        %v336 = vld [vmem:[#allocation4 + $0xe8] sm:$0xff]
        %v337 = vld [vmem:[#allocation4 + $0xf0] sm:$0xff]
        %v338 = vld [vmem:[#allocation4 + $0xf8] sm:$0xff]
        %v339 = vld [vmem:[#allocation9] ss:$8 sm:$0x3]
        %v341 = vperm.slane %v339, 0
        %v342 = vperm.slane %v339, 1
        %345 = vmatpush.msra.mxu0 %v337
        %346 = vmatpush.msra.mxu0 %v335
        %347 = vmatpush.msra.mxu0 %v333
        %348 = vmatpush.msra.mxu0 %v331
        %349 = vmatpush.msra.mxu0 %v329
        %350 = vmatpush.msra.mxu0 %v327
        %351 = vmatpush.msra.mxu0 %v325
        %352 = vmatpush.msra.mxu0 %v323
        %353 = vmatpush.msra.mxu0 %v321
        %354 = vmatpush.msra.mxu0 %v319
        %355 = vmatpush.msra.mxu0 %v317
        %356 = vmatpush.msra.mxu0 %v315
        %357 = vmatpush.msra.mxu0 %v313
        %358 = vmatpush.msra.mxu0 %v311
        %359 = vmatpush.msra.mxu0 %v309
        %360 = vmatpush.msra.mxu0 %v307
        %361 = vmatmul.f32.gmra.mxu0 %v306
        %v362 = vpop.f32.mrf.mxu0
        %v363 = vadd.f32 %v341, %v362
        %364 = vdwg.mxu0
        %365 = vmatpush.msra.mxu0 %v338
        %366 = vmatpush.msra.mxu0 %v336
        %367 = vmatpush.msra.mxu0 %v334
        %368 = vmatpush.msra.mxu0 %v332
        %369 = vmatpush.msra.mxu0 %v330
        %370 = vmatpush.msra.mxu0 %v328
        %371 = vmatpush.msra.mxu0 %v326
        %372 = vmatpush.msra.mxu0 %v324
        %373 = vmatpush.msra.mxu0 %v322
        %374 = vmatpush.msra.mxu0 %v320
        %375 = vmatpush.msra.mxu0 %v318
        %376 = vmatpush.msra.mxu0 %v316
        %377 = vmatpush.msra.mxu0 %v314
        %378 = vmatpush.msra.mxu0 %v312
        %379 = vmatpush.msra.mxu0 %v310
        %380 = vmatpush.msra.mxu0 %v308
        %381 = vmatmul.f32.gmra.mxu0 %v306
        %v382 = vpop.f32.mrf.mxu0
        %v383 = vadd.f32 %v342, %v382
        %384 = vdwg.mxu0
        %v385 = vmul.f32 %v306, %v363
        %v386 = vadd.f32 %v385, %v306
        %v387 = vmax.f32 %v383, 0.0
        %v388 = vmul.f32 %v386, %v387
        %v389 = vld [vmem:[#allocation6] sm:$0xff]
        %v390 = vld [vmem:[#allocation6 + $0x8] sm:$0xff]
        %v391 = vld [vmem:[#allocation6 + $0x10] sm:$0xff]
        %v392 = vld [vmem:[#allocation6 + $0x18] sm:$0xff]
        %v393 = vld [vmem:[#allocation6 + $0x20] sm:$0xff]
        %v394 = vld [vmem:[#allocation6 + $0x28] sm:$0xff]
        %v395 = vld [vmem:[#allocation6 + $0x30] sm:$0xff]
        %v396 = vld [vmem:[#allocation6 + $0x38] sm:$0xff]
        %v397 = vld [vmem:[#allocation6 + $0x40] sm:$0xff]
        %v398 = vld [vmem:[#allocation6 + $0x48] sm:$0xff]
        %v399 = vld [vmem:[#allocation6 + $0x50] sm:$0xff]
        %v400 = vld [vmem:[#allocation6 + $0x58] sm:$0xff]
        %v401 = vld [vmem:[#allocation6 + $0x60] sm:$0xff]
        %v402 = vld [vmem:[#allocation6 + $0x68] sm:$0xff]
        %v403 = vld [vmem:[#allocation6 + $0x70] sm:$0xff]
        %v404 = vld [vmem:[#allocation6 + $0x78] sm:$0xff]
        %v405 = vld [vmem:[#allocation6 + $0x80] sm:$0xff]
        %v406 = vld [vmem:[#allocation6 + $0x88] sm:$0xff]
        %v407 = vld [vmem:[#allocation6 + $0x90] sm:$0xff]
        %v408 = vld [vmem:[#allocation6 + $0x98] sm:$0xff]
        %v409 = vld [vmem:[#allocation6 + $0xa0] sm:$0xff]
        %v410 = vld [vmem:[#allocation6 + $0xa8] sm:$0xff]
        %v411 = vld [vmem:[#allocation6 + $0xb0] sm:$0xff]
        %v412 = vld [vmem:[#allocation6 + $0xb8] sm:$0xff]
        %v413 = vld [vmem:[#allocation6 + $0xc0] sm:$0xff]
        %v414 = vld [vmem:[#allocation6 + $0xc8] sm:$0xff]
        %v415 = vld [vmem:[#allocation6 + $0xd0] sm:$0xff]
        %v416 = vld [vmem:[#allocation6 + $0xd8] sm:$0xff]
        %v417 = vld [vmem:[#allocation6 + $0xe0] sm:$0xff]
        %v418 = vld [vmem:[#allocation6 + $0xe8] sm:$0xff]
        %v419 = vld [vmem:[#allocation6 + $0xf0] sm:$0xff]
        %v420 = vld [vmem:[#allocation6 + $0xf8] sm:$0xff]
        %s421 = scalar_lea.vmem [#allocation9], 1
        %v422 = vld [vmem:[%s421] ss:$8 sm:$0x3]
        %v424 = vperm.slane %v422, 0
        %v425 = vperm.slane %v422, 1
        %428 = vmatpush.msra.mxu0 %v419
        %429 = vmatpush.msra.mxu0 %v417
        %430 = vmatpush.msra.mxu0 %v415
        %431 = vmatpush.msra.mxu0 %v413
        %432 = vmatpush.msra.mxu0 %v411
        %433 = vmatpush.msra.mxu0 %v409
        %434 = vmatpush.msra.mxu0 %v407
        %435 = vmatpush.msra.mxu0 %v405
        %436 = vmatpush.msra.mxu0 %v403
        %437 = vmatpush.msra.mxu0 %v401
        %438 = vmatpush.msra.mxu0 %v399
        %439 = vmatpush.msra.mxu0 %v397
        %440 = vmatpush.msra.mxu0 %v395
        %441 = vmatpush.msra.mxu0 %v393
        %442 = vmatpush.msra.mxu0 %v391
        %443 = vmatpush.msra.mxu0 %v389
        %444 = vmatmul.f32.gmra.mxu0 %v388
        %v445 = vpop.f32.mrf.mxu0
        %v446 = vadd.f32 %v424, %v445
        %447 = vdwg.mxu0
        %448 = vmatpush.msra.mxu0 %v420
        %449 = vmatpush.msra.mxu0 %v418
        %450 = vmatpush.msra.mxu0 %v416
        %451 = vmatpush.msra.mxu0 %v414
        %452 = vmatpush.msra.mxu0 %v412
        %453 = vmatpush.msra.mxu0 %v410
        %454 = vmatpush.msra.mxu0 %v408
        %455 = vmatpush.msra.mxu0 %v406
        %456 = vmatpush.msra.mxu0 %v404
        %457 = vmatpush.msra.mxu0 %v402
        %458 = vmatpush.msra.mxu0 %v400
        %459 = vmatpush.msra.mxu0 %v398
        %460 = vmatpush.msra.mxu0 %v396
        %461 = vmatpush.msra.mxu0 %v394
        %462 = vmatpush.msra.mxu0 %v392
        %463 = vmatpush.msra.mxu0 %v390
        %464 = vmatmul.f32.gmra.mxu0 %v388
        %v465 = vpop.f32.mrf.mxu0
        %v466 = vadd.f32 %v425, %v465
        %467 = vdwg.mxu0
        %v468 = vmul.f32 %v306, %v446
        %v469 = vadd.f32 %v468, %v388
        %v470 = vmax.f32 %v466, 0.0
        %v471 = vmul.f32 %v469, %v470
        %v472 = vld [vmem:[#allocation7] sm:$0xff]
        %v473 = vld [vmem:[#allocation7 + $0x8] sm:$0xff]
        %v474 = vld [vmem:[#allocation7 + $0x10] sm:$0xff]
        %v475 = vld [vmem:[#allocation7 + $0x18] sm:$0xff]
        %v476 = vld [vmem:[#allocation7 + $0x20] sm:$0xff]
        %v477 = vld [vmem:[#allocation7 + $0x28] sm:$0xff]
        %v478 = vld [vmem:[#allocation7 + $0x30] sm:$0xff]
        %v479 = vld [vmem:[#allocation7 + $0x38] sm:$0xff]
        %v480 = vld [vmem:[#allocation7 + $0x40] sm:$0xff]
        %v481 = vld [vmem:[#allocation7 + $0x48] sm:$0xff]
        %v482 = vld [vmem:[#allocation7 + $0x50] sm:$0xff]
        %v483 = vld [vmem:[#allocation7 + $0x58] sm:$0xff]
        %v484 = vld [vmem:[#allocation7 + $0x60] sm:$0xff]
        %v485 = vld [vmem:[#allocation7 + $0x68] sm:$0xff]
        %v486 = vld [vmem:[#allocation7 + $0x70] sm:$0xff]
        %v487 = vld [vmem:[#allocation7 + $0x78] sm:$0xff]
        %v488 = vld [vmem:[#allocation9 + $0x2] ss:$0 sm:$0xff]
        %489 = vmatpush.msra.mxu0 %v487
        %490 = vmatpush.msra.mxu0 %v486
        %491 = vmatpush.msra.mxu0 %v485
        %492 = vmatpush.msra.mxu0 %v484
        %493 = vmatpush.msra.mxu0 %v483
        %494 = vmatpush.msra.mxu0 %v482
        %495 = vmatpush.msra.mxu0 %v481
        %496 = vmatpush.msra.mxu0 %v480
        %497 = vmatpush.msra.mxu0 %v479
        %498 = vmatpush.msra.mxu0 %v478
        %499 = vmatpush.msra.mxu0 %v477
        %500 = vmatpush.msra.mxu0 %v476
        %501 = vmatpush.msra.mxu0 %v475
        %502 = vmatpush.msra.mxu0 %v474
        %503 = vmatpush.msra.mxu0 %v473
        %504 = vmatpush.msra.mxu0 %v472
        %505 = vmatmul.f32.gmra.mxu0 %v471
        %v506 = vpop.f32.mrf.mxu0
        %v507 = vadd.f32 %v488, %v506
        %508 = vdwg.mxu0
        %v509 = vmax.f32 %v507, 0.0
        %v510 = vld [vmem:[#allocation9 + $0x3] ss:$0 sm:$0xff]
        %v511 = vmul.f32 %v509, %v510
        %512 = vadd.xlane.f32.xlu0 %v511
        %v513 = vpop.xlane.xlu0 %512
        %v514 = vld [vmem:[#allocation9 + $0x4] ss:$0 sm:$0xff]
        %v515 = vadd.f32 %v513, %v514
        %vm516 = vcmask 7168
        %517 = vst.msk [vmem:[%s305] sm:$0xff] %vm516, %v515
        %p518 = scmp.lt.s32.totalorder %s21, 1
        %s519 = scalar_select %p518, %s21, 1
        %s520 = smul.addr %s519, 8
        %s521 = scalar_lea.vmem %s5, %s520
        // Predicated region
        $region61: #{tpu_custom_call.1} parent=39 // pred_check
          %p522 = pneg %p149
        $region62: #{tpu_custom_call.1} parent=39 // pred_check_branch
          %524 = sbr.rel (%p522) target = $region64
        $region63: #{tpu_custom_call.1} parent=39 // pred_region
          _
        $region64: #{tpu_custom_call.1} parent=39 // pred_fallthru
          _
      $region40: #{tpu_custom_call.1} parent=5 // pred_fallthru
        _
      %p525 = scmp.le.s32.totalorder 2, %s16
      // Predicated region
      $region65: #{tpu_custom_call.1} parent=5 // pred_check
        %p526 = pneg %p525
      $region66: #{tpu_custom_call.1} parent=5 // pred_check_branch
        %528 = sbr.rel (%p526) target = $region68
      $region67: #{tpu_custom_call.1} parent=5 // pred_region
        %s529 = ssub.s32 %s16, 2
        // Predicated region
        $region69: #{tpu_custom_call.1} parent=67 // pred_check
          %p530 = pneg %p155
        $region70: #{tpu_custom_call.1} parent=67 // pred_check_branch
          %532 = sbr.rel (%p530) target = $region72
        $region71: #{tpu_custom_call.1} parent=67 // pred_region
          %p533 = scmp.lt.s32.totalorder %s22, 1
          %s534 = scalar_select %p533, %s22, 1
          %s535 = smul.addr %s534, 8
          %s536 = scalar_lea.vmem %s5, %s535
        $region72: #{tpu_custom_call.1} parent=67 // pred_fallthru
          _
      $region68: #{tpu_custom_call.1} parent=5 // pred_fallthru
        _
    $region6: #{tpu_custom_call.1} parent=1 // loop_footer
      %s20 = sadd.s32 1, %s16
    $region7: #{tpu_custom_call.1} parent=1 // loop_footer_branch
      %15 = sbr.rel target = $region3
    $region8: #{tpu_custom_call.1} parent=1 // loop_exit
      _
    %537 = vsyncpa [#allocation3], 1
    %s538 = scalar_lea.sflag [#allocation3], 1
    %539 = vsyncpa %s538, 1
    %540 = vsyncpa [#allocation5], 1
    %541 = vsyncpa [#allocation8], 1

</llo_original>
